<compile_context>
chip_gen: v6e
topology: v6e:2x2x1
jax: 0.10.0
libtpu: 0.0.40
codegen_flags: <defaults>
</compile_context>

<pallas_src>
import jax
import jax.numpy as jnp
from jax.experimental import pallas as pl
from jax.experimental.pallas import tpu as pltpu


def _round_up(x, mult):
    return ((x + mult - 1) // mult) * mult


def _cdiv(a, b):
    return (a + b - 1) // b


# ---------------------------------------------------------------------------
# Kernel
# ---------------------------------------------------------------------------
def tiny_mlp_kernel(x_ref, w1_ref, b1_ref, w2_ref, b2_ref, w3_ref, b3_ref, o_ref):
    # linear1 + ReLU : (tm, 19) f32 -> bf16, contract K=19 (compiler-masked)
    x = x_ref[...].astype(jnp.bfloat16)
    h1 = jnp.dot(x, w1_ref[...], preferred_element_type=jnp.float32)
    h1 = jnp.maximum(h1 + b1_ref[...], 0.0)
    # linear2 + ReLU : (tm, 256) x (256, 384)  (288 zero-padded to 384)
    h2 = jnp.dot(h1.astype(jnp.bfloat16), w2_ref[...],
                 preferred_element_type=jnp.float32)
    h2 = jnp.maximum(h2 + b2_ref[...], 0.0)
    # linear3 + ReLU : (tm, 384) x (384, 128)  (n*m zero-padded to 128)
    h3 = jnp.dot(h2.astype(jnp.bfloat16), w3_ref[...],
                 preferred_element_type=jnp.float32)
    o_ref[...] = jnp.maximum(h3 + b3_ref[...], 0.0).astype(o_ref.dtype)


# ---------------------------------------------------------------------------
# Parameters
# ---------------------------------------------------------------------------
def init_params(key, n, m):
    """Deterministic init mimicking torch.nn.Linear (uniform +-1/sqrt(fan_in)).

    Returns f32 'master' params: weights (in, out), biases (1, out).
    """
    d_in = n * m + 3
    dims = [(d_in, 256), (256, 288), (288, n * m)]
    params = []
    keys = jax.random.split(key, 2 * len(dims))
    for i, (fin, fout) in enumerate(dims):
        bound = 1.0 / jnp.sqrt(fin)
        w = jax.random.uniform(keys[2 * i], (fin, fout), jnp.float32, -bound, bound)
        b = jax.random.uniform(keys[2 * i + 1], (1, fout), jnp.float32, -bound, bound)
        params.extend([w, b])
    return tuple(params)


def prepare_padded_params(params, n, m):
    """One-time prep: bf16 weights, lane-aligned zero padding on hidden2/out.

    w1 keeps its real (d_in, 256) shape (no input-lane padding needed);
    hidden2 288 -> 384 and out n*m -> 128 are zero-padded so padded lanes
    cannot leak into real outputs.
    """
    w1, b1, w2, b2, w3, b3 = params
    d_in = n * m + 3
    out_dim = n * m
    h2_pad = _round_up(288, 128)       # 288 -> 384
    out_pad = _round_up(out_dim, 128)  # 16  -> 128

    w1p = w1.astype(jnp.bfloat16)                               # (d_in, 256)
    b1p = b1.astype(jnp.float32)                                # (1, 256)

    w2p = jnp.zeros((256, h2_pad), jnp.bfloat16).at[:, :288].set(
        w2.astype(jnp.bfloat16))
    b2p = jnp.zeros((1, h2_pad), jnp.float32).at[:, :288].set(b2)

    w3p = jnp.zeros((h2_pad, out_pad), jnp.bfloat16).at[:288, :out_dim].set(
        w3.astype(jnp.bfloat16))
    b3p = jnp.zeros((1, out_pad), jnp.float32).at[:, :out_dim].set(b3)

    return (w1p, b1p, w2p, b2p, w3p, b3p)


# ---------------------------------------------------------------------------
# Tiling / forward
# ---------------------------------------------------------------------------
_TM_MAX = 1024       # rows/tile -> ~6 MiB working set, safe on v5e's 16 MiB scoped VMEM
_ROW_QUANTUM = 16    # bf16 sublane packing (16 rows / packed vreg)


def _choose_tiling(b):
    """Pick (tm, steps, b_pad): tm <= _TM_MAX, waste < one 16-row quantum per
    step, and >= 2 grid steps once there is enough work (v7x megacore)."""
    b_q = _round_up(max(b, _ROW_QUANTUM), _ROW_QUANTUM)
    min_steps = 2 if b_q >= 512 else 1
    steps = max(_cdiv(b_q, _TM_MAX), min_steps)
    tm = _round_up(_cdiv(b_q, steps), _ROW_QUANTUM)
    steps = _cdiv(b_q, tm)
    return tm, steps, steps * tm


def tiny_model_forward(x, padded_params, out_dim):
    """Batched forward.  Call with as many rows as possible (RL steps stacked)
    to amortize the fixed pallas_call / per-grid-step overhead."""
    w1, b1, w2, b2, w3, b3 = padded_params
    b, d_in = x.shape
    assert d_in == w1.shape[0]
    out_pad = w3.shape[1]

    tm, steps, b_pad = _choose_tiling(b)
    if b_pad != b:
        # Only the batch axis is padded (19 f32 columns/row) -- cheap, unlike
        # the old full (b_pad, 128) bf16 padding pass.
        x = jnp.pad(x, ((0, b_pad - b), (0, 0)))

    row_map = lambda i: (i, 0)
    const_map = lambda i: (0, 0)   # weights/biases stay VMEM-resident

    out = pl.pallas_call(
        tiny_mlp_kernel,
        out_shape=jax.ShapeDtypeStruct((b_pad, out_pad), jnp.bfloat16),
        grid_spec=pltpu.PrefetchScalarGridSpec(
            num_scalar_prefetch=0,
            grid=(steps,),
            in_specs=[
                pl.BlockSpec((tm, d_in), row_map),   # ragged lane dim == full dim
                pl.BlockSpec(w1.shape, const_map),
                pl.BlockSpec(b1.shape, const_map),
                pl.BlockSpec(w2.shape, const_map),
                pl.BlockSpec(b2.shape, const_map),
                pl.BlockSpec(w3.shape, const_map),
                pl.BlockSpec(b3.shape, const_map),
            ],
            out_specs=pl.BlockSpec((tm, out_pad), row_map),
        ),
        compiler_params=pltpu.CompilerParams(
            dimension_semantics=("parallel",),
            vmem_limit_bytes=32 * 1024 * 1024,
        ),
    )(x, w1, b1, w2, b2, w3, b3)

    # Slice off batch + lane padding (padded lanes are exactly zero); return
    # f32 to match the PyTorch module's output dtype.
    return out[:b, :out_dim].astype(jnp.float32)


# ---------------------------------------------------------------------------
# Reference
# ---------------------------------------------------------------------------
def reference_forward(x, params):
    """Pure-JAX reference using the same bf16 weight/activation quantization."""
    w1, b1, w2, b2, w3, b3 = params
    bf = lambda a: a.astype(jnp.bfloat16).astype(jnp.float32)
    h = jnp.maximum(bf(x) @ bf(w1) + b1, 0.0)
    h = jnp.maximum(bf(h) @ bf(w2) + b2, 0.0)
    return jnp.maximum(bf(h) @ bf(w3) + b3, 0.0)


if __name__ == "__main__":
    n, m = 4, 4            # grid size -> n*m = 16
    d_in = n * m + 3       # 19 features

    key = jax.random.PRNGKey(0)
    k_params, k_x1, k_x2 = jax.random.split(key, 3)
    params = init_params(k_params, n, m)
    padded_params = prepare_padded_params(params, n, m)

    # Small batch (single-tile grid).
    batch = 8
    x = jax.random.normal(k_x1, (batch, d_in), dtype=jnp.float32)
    out = jax.block_until_ready(tiny_model_forward(x, padded_params, n * m))
    ref = reference_forward(x, params)
    assert out.shape == (batch, n * m)
    assert jnp.allclose(out, ref, atol=1e-2, rtol=2e-2), float(
        jnp.max(jnp.abs(out - ref)))

    # Batch that is not a tile multiple: exercises minimal batch padding and
    # the >= 2-step "parallel" grid (v7x megacore path).
    big_batch = 600
    xb = jax.random.normal(k_x2, (big_batch, d_in), dtype=jnp.float32)
    outb = jax.block_until_ready(tiny_model_forward(xb, padded_params, n * m))
    refb = reference_forward(xb, params)
    assert outb.shape == (big_batch, n * m)
    assert jnp.allclose(outb, refb, atol=1e-2, rtol=2e-2), float(
        jnp.max(jnp.abs(outb - refb)))

    print("KERNEL_OK")
</pallas_src>

<mosaic_0001>
module attributes {stable_mosaic.version = 11 : i64} {
  func.func @tiny_mlp_kernel(%arg0: i32, %arg1: memref<16x19xf32, #tpu.memory_space<vmem>>, %arg2: memref<19x256xbf16, #tpu.memory_space<vmem>>, %arg3: memref<1x256xf32, #tpu.memory_space<vmem>>, %arg4: memref<256x384xbf16, #tpu.memory_space<vmem>>, %arg5: memref<1x384xf32, #tpu.memory_space<vmem>>, %arg6: memref<384x128xbf16, #tpu.memory_space<vmem>>, %arg7: memref<1x128xf32, #tpu.memory_space<vmem>>, %arg8: memref<16x128xbf16, #tpu.memory_space<vmem>>) attributes {dimension_semantics = [#tpu.dimension_semantics<parallel>], iteration_bounds = array<i64: 1>, scalar_prefetch = 0 : i64, scratch_operands = 0 : i64, tpu.core_type = #tpu.core_type<tc>, window_params = [{transform_indices = @transform_0, window_bounds = array<i64: 16, 19>}, {pipeline_mode = #tpu.pipeline_mode<synchronous>, transform_indices = @transform_1, window_bounds = array<i64: 19, 256>}, {pipeline_mode = #tpu.pipeline_mode<synchronous>, transform_indices = @transform_2, window_bounds = array<i64: 1, 256>}, {pipeline_mode = #tpu.pipeline_mode<synchronous>, transform_indices = @transform_3, window_bounds = array<i64: 256, 384>}, {pipeline_mode = #tpu.pipeline_mode<synchronous>, transform_indices = @transform_4, window_bounds = array<i64: 1, 384>}, {pipeline_mode = #tpu.pipeline_mode<synchronous>, transform_indices = @transform_5, window_bounds = array<i64: 384, 128>}, {pipeline_mode = #tpu.pipeline_mode<synchronous>, transform_indices = @transform_6, window_bounds = array<i64: 1, 128>}, {transform_indices = @transform_7, window_bounds = array<i64: 16, 128>}]} {
    %c0 = arith.constant 0 : index
    %c0_0 = arith.constant 0 : index
    %0 = vector.load %arg1[%c0, %c0_0] : memref<16x19xf32, #tpu.memory_space<vmem>>, vector<16x19xf32>
    %1 = arith.truncf %0 : vector<16x19xf32> to vector<16x19xbf16>
    %c0_1 = arith.constant 0 : index
    %c0_2 = arith.constant 0 : index
    %2 = vector.load %arg2[%c0_1, %c0_2] : memref<19x256xbf16, #tpu.memory_space<vmem>>, vector<19x256xbf16>
    %cst = arith.constant dense<0.000000e+00> : vector<16x256xf32>
    %3 = tpu.matmul %1, %2, %cst {dimension_numbers = #tpu.dot_dimension_numbers<[1], [0], [0], [1], [0, 0, 1, 1], [], []>} : vector<16x19xbf16>, vector<19x256xbf16>, vector<16x256xf32> -> vector<16x256xf32>
    %c0_3 = arith.constant 0 : index
    %c0_4 = arith.constant 0 : index
    %4 = vector.load %arg3[%c0_3, %c0_4] : memref<1x256xf32, #tpu.memory_space<vmem>>, vector<1x256xf32>
    %5 = vector.broadcast %4 : vector<1x256xf32> to vector<16x256xf32>
    %6 = arith.addf %3, %5 : vector<16x256xf32>
    %cst_5 = arith.constant 0.000000e+00 : f32
    %7 = vector.broadcast %cst_5 : f32 to vector<16x256xf32>
    %8 = arith.maximumf %6, %7 : vector<16x256xf32>
    %9 = arith.truncf %8 : vector<16x256xf32> to vector<16x256xbf16>
    %c0_6 = arith.constant 0 : index
    %c0_7 = arith.constant 0 : index
    %10 = vector.load %arg4[%c0_6, %c0_7] : memref<256x384xbf16, #tpu.memory_space<vmem>>, vector<256x384xbf16>
    %cst_8 = arith.constant dense<0.000000e+00> : vector<16x384xf32>
    %11 = tpu.matmul %9, %10, %cst_8 {dimension_numbers = #tpu.dot_dimension_numbers<[1], [0], [0], [1], [0, 0, 1, 1], [], []>} : vector<16x256xbf16>, vector<256x384xbf16>, vector<16x384xf32> -> vector<16x384xf32>
    %c0_9 = arith.constant 0 : index
    %c0_10 = arith.constant 0 : index
    %12 = vector.load %arg5[%c0_9, %c0_10] : memref<1x384xf32, #tpu.memory_space<vmem>>, vector<1x384xf32>
    %13 = vector.broadcast %12 : vector<1x384xf32> to vector<16x384xf32>
    %14 = arith.addf %11, %13 : vector<16x384xf32>
    %cst_11 = arith.constant 0.000000e+00 : f32
    %15 = vector.broadcast %cst_11 : f32 to vector<16x384xf32>
    %16 = arith.maximumf %14, %15 : vector<16x384xf32>
    %17 = arith.truncf %16 : vector<16x384xf32> to vector<16x384xbf16>
    %c0_12 = arith.constant 0 : index
    %c0_13 = arith.constant 0 : index
    %18 = vector.load %arg6[%c0_12, %c0_13] : memref<384x128xbf16, #tpu.memory_space<vmem>>, vector<384x128xbf16>
    %cst_14 = arith.constant dense<0.000000e+00> : vector<16x128xf32>
    %19 = tpu.matmul %17, %18, %cst_14 {dimension_numbers = #tpu.dot_dimension_numbers<[1], [0], [0], [1], [0, 0, 1, 1], [], []>} : vector<16x384xbf16>, vector<384x128xbf16>, vector<16x128xf32> -> vector<16x128xf32>
    %c0_15 = arith.constant 0 : index
    %c0_16 = arith.constant 0 : index
    %20 = vector.load %arg7[%c0_15, %c0_16] : memref<1x128xf32, #tpu.memory_space<vmem>>, vector<1x128xf32>
    %21 = vector.broadcast %20 : vector<1x128xf32> to vector<16x128xf32>
    %22 = arith.addf %19, %21 : vector<16x128xf32>
    %cst_17 = arith.constant 0.000000e+00 : f32
    %23 = vector.broadcast %cst_17 : f32 to vector<16x128xf32>
    %24 = arith.maximumf %22, %23 : vector<16x128xf32>
    %25 = arith.truncf %24 : vector<16x128xf32> to vector<16x128xbf16>
    %c0_18 = arith.constant 0 : index
    %c0_19 = arith.constant 0 : index
    %26 = vector.load %arg8[%c0_18, %c0_19] : memref<16x128xbf16, #tpu.memory_space<vmem>>, vector<16x128xbf16>
    tpu.vector_store %arg8[%c0_18, %c0_19], %25 {strides = array<i32>} : memref<16x128xbf16, #tpu.memory_space<vmem>>, vector<16x128xbf16>,
    return
  }
  func.func @transform_0(%arg0: i32) -> (i32, i32) {
    %c0_i32 = arith.constant 0 : i32
    %c0_i32_0 = arith.constant 0 : i32
    return %arg0, %c0_i32 : i32, i32
  }
  func.func @transform_1(%arg0: i32) -> (i32, i32) {
    %c0_i32 = arith.constant 0 : i32
    %c0_i32_0 = arith.constant 0 : i32
    %c0_i32_1 = arith.constant 0 : i32
    return %c0_i32, %c0_i32_0 : i32, i32
  }
  func.func @transform_2(%arg0: i32) -> (i32, i32) {
    %c0_i32 = arith.constant 0 : i32
    %c0_i32_0 = arith.constant 0 : i32
    %c0_i32_1 = arith.constant 0 : i32
    return %c0_i32, %c0_i32_0 : i32, i32
  }
  func.func @transform_3(%arg0: i32) -> (i32, i32) {
    %c0_i32 = arith.constant 0 : i32
    %c0_i32_0 = arith.constant 0 : i32
    %c0_i32_1 = arith.constant 0 : i32
    return %c0_i32, %c0_i32_0 : i32, i32
  }
  func.func @transform_4(%arg0: i32) -> (i32, i32) {
    %c0_i32 = arith.constant 0 : i32
    %c0_i32_0 = arith.constant 0 : i32
    %c0_i32_1 = arith.constant 0 : i32
    return %c0_i32, %c0_i32_0 : i32, i32
  }
  func.func @transform_5(%arg0: i32) -> (i32, i32) {
    %c0_i32 = arith.constant 0 : i32
    %c0_i32_0 = arith.constant 0 : i32
    %c0_i32_1 = arith.constant 0 : i32
    return %c0_i32, %c0_i32_0 : i32, i32
  }
  func.func @transform_6(%arg0: i32) -> (i32, i32) {
    %c0_i32 = arith.constant 0 : i32
    %c0_i32_0 = arith.constant 0 : i32
    %c0_i32_1 = arith.constant 0 : i32
    return %c0_i32, %c0_i32_0 : i32, i32
  }
  func.func @transform_7(%arg0: i32) -> (i32, i32) {
    %c0_i32 = arith.constant 0 : i32
    %c0_i32_0 = arith.constant 0 : i32
    return %arg0, %c0_i32 : i32, i32
  }
}

</mosaic_0001>

<llo_original>
// kernel: tpu_custom_call.1
$region0: #{tpu_custom_call.1}
  #allocation0 [shape = 'u32[]', space=smem, size = 0x4, offset = 0x4, fixed_abs, tag = 'smem constant byte address 0x4 - core index']
  #allocation1 [shape = 'u32[144,128]{1,0:T(1,128)}', space=vmem, size = 0x12000, scoped, tag = 'internal scratch']
  %s0 = inlined_call_operand.hbm [shape: f32[16,19], index: 0, kind: input, shape index: {}]
  %s1 = inlined_call_operand.hbm [shape: bf16[19,256], index: 1, kind: input, shape index: {}]
  %s2 = inlined_call_operand.vmem [shape: f32[1,256], index: 2, kind: input, shape index: {}]
  %s3 = inlined_call_operand.hbm [shape: bf16[256,384], index: 3, kind: input, shape index: {}]
  %s4 = inlined_call_operand.vmem [shape: f32[1,384], index: 4, kind: input, shape index: {}]
  %s5 = inlined_call_operand.hbm [shape: bf16[384,128], index: 5, kind: input, shape index: {}]
  %s6 = inlined_call_operand.vmem [shape: f32[1,128], index: 6, kind: input, shape index: {}]
  %s7 = inlined_call_operand.hbm [shape: bf16[16,128], index: 7, kind: output, shape index: {}]
  %s8 = sld [smem:[#allocation0]]
  $region54: #{tpu_custom_call.1} parent=0
    _
  %s10 = ssub.s32 1, %s8
  %s11 = scalar_select 0, %s10, %s8
  $region1: #{tpu_custom_call.1} parent=0
    #allocation2 [shape = 'u8[8192]{0}', space=vmem, size = 0x2000, scoped, tag = 'input window, operand 0, single buffered']
    #allocation3 [shape = 's32[1]{0}', space=sflag, size = 0x4, scoped, tag = 'scoped memory for tpu_custom_call.1']
    #allocation4 [shape = 's32[1]{0}', space=sflag, size = 0x4, scoped, tag = 'scoped memory for tpu_custom_call.1']
    #allocation5 [shape = 'u8[12288]{0}', space=vmem, size = 0x3000, scoped, tag = 'input window, operand 1, single buffered']
    #allocation6 [shape = 's32[1]{0}', space=sflag, size = 0x4, scoped, tag = 'scoped memory for tpu_custom_call.1']
    #allocation7 [shape = 'u8[196608]{0}', space=vmem, size = 0x30000, scoped, tag = 'input window, operand 3, single buffered']
    #allocation8 [shape = 'u8[98304]{0}', space=vmem, size = 0x18000, scoped, tag = 'input window, operand 5, single buffered']
    #allocation9 [shape = 's32[1]{0}', space=sflag, size = 0x4, scoped, tag = 'scoped memory for tpu_custom_call.1']
    #allocation10 [shape = 'u8[4096]{0}', space=vmem, size = 0x1000, scoped, tag = 'output window, operand 0, single buffered']
    %12 = vsyncpa [#allocation3], 0
    %13 = vsyncpa [#allocation6], 0
    %14 = vsyncpa [#allocation9], 0
    %15 = vsyncpa [#allocation4], 0
    // Predicated region
    $region2: #{tpu_custom_call.1} parent=1 // pred_check
      _
    $region3: #{tpu_custom_call.1} parent=1 // pred_check_branch
      %17 = sbr.rel (0) target = $region5
    $region4: #{tpu_custom_call.1} parent=1 // pred_region
      %s19 = ssub.s32 256, 256
      %20 = vsyncadd [#allocation3], %s19
      %s21 = sshll.u32 [#allocation2], 4
      %s22 = int_to_ptr.vmem [resolvable:$true] %s21
      %27 = dma.hbm_to_vmem [thread:$0]  %s0, 256, %s22, [#allocation3], 128, 128, 8
    $region5: #{tpu_custom_call.1} parent=1 // pred_fallthru
      _
    // Predicated region
    $region6: #{tpu_custom_call.1} parent=1 // pred_check
      _
    $region7: #{tpu_custom_call.1} parent=1 // pred_check_branch
      %29 = sbr.rel (0) target = $region9
    $region8: #{tpu_custom_call.1} parent=1 // pred_region
      %s31 = ssub.s32 384, 384
      %32 = vsyncadd [#allocation6], %s31
      %s33 = sshll.u32 [#allocation5], 4
      %s34 = int_to_ptr.vmem [resolvable:$true] %s33
      %39 = dma.hbm_to_vmem [thread:$0]  %s1, 384, %s34, [#allocation6], 128, 128, 8
    $region9: #{tpu_custom_call.1} parent=1 // pred_fallthru
      _
    // Predicated region
    $region10: #{tpu_custom_call.1} parent=1 // pred_check
      _
    $region11: #{tpu_custom_call.1} parent=1 // pred_check_branch
      %41 = sbr.rel (0) target = $region13
    $region12: #{tpu_custom_call.1} parent=1 // pred_region
      _
    $region13: #{tpu_custom_call.1} parent=1 // pred_fallthru
      _
    // Predicated region
    $region14: #{tpu_custom_call.1} parent=1 // pred_check
      _
    $region15: #{tpu_custom_call.1} parent=1 // pred_check_branch
      %43 = sbr.rel (0) target = $region17
    $region16: #{tpu_custom_call.1} parent=1 // pred_region
      %s45 = ssub.s32 6144, 6144
      %46 = vsyncadd [#allocation6], %s45
      %s47 = sshll.u32 [#allocation7], 4
      %s48 = int_to_ptr.vmem [resolvable:$true] %s47
      %53 = dma.hbm_to_vmem [thread:$0]  %s3, 6144, %s48, [#allocation6], 192, 192, 12
    $region17: #{tpu_custom_call.1} parent=1 // pred_fallthru
      _
    // Predicated region
    $region18: #{tpu_custom_call.1} parent=1 // pred_check
      _
    $region19: #{tpu_custom_call.1} parent=1 // pred_check_branch
      %55 = sbr.rel (0) target = $region21
    $region20: #{tpu_custom_call.1} parent=1 // pred_region
      _
    $region21: #{tpu_custom_call.1} parent=1 // pred_fallthru
      _
    // Predicated region
    $region22: #{tpu_custom_call.1} parent=1 // pred_check
      _
    $region23: #{tpu_custom_call.1} parent=1 // pred_check_branch
      %57 = sbr.rel (0) target = $region25
    $region24: #{tpu_custom_call.1} parent=1 // pred_region
      %s59 = ssub.s32 3072, 3072
      %60 = vsyncadd [#allocation9], %s59
      %s61 = sshll.u32 [#allocation8], 4
      %s62 = int_to_ptr.vmem [resolvable:$true] %s61
      %67 = dma.hbm_to_vmem [thread:$0]  %s5, 3072, %s62, [#allocation9], 64, 64, 4
    $region25: #{tpu_custom_call.1} parent=1 // pred_fallthru
      _
    // Predicated region
    $region26: #{tpu_custom_call.1} parent=1 // pred_check
      _
    $region27: #{tpu_custom_call.1} parent=1 // pred_check_branch
      %69 = sbr.rel (0) target = $region29
    $region28: #{tpu_custom_call.1} parent=1 // pred_region
      _
    $region29: #{tpu_custom_call.1} parent=1 // pred_fallthru
      _
    // Predicated region
    $region30: #{tpu_custom_call.1} parent=1 // pred_check
      _
    $region31: #{tpu_custom_call.1} parent=1 // pred_check_branch
      %71 = sbr.rel (0) target = $region33
    $region32: #{tpu_custom_call.1} parent=1 // pred_region
      %72 = dma.done [#allocation3], 256
    $region33: #{tpu_custom_call.1} parent=1 // pred_fallthru
      _
    // Predicated region
    $region34: #{tpu_custom_call.1} parent=1 // pred_check
      _
    $region35: #{tpu_custom_call.1} parent=1 // pred_check_branch
      %74 = sbr.rel (0) target = $region37
    $region36: #{tpu_custom_call.1} parent=1 // pred_region
      %75 = dma.done [#allocation6], 384
    $region37: #{tpu_custom_call.1} parent=1 // pred_fallthru
      _
    // Predicated region
    $region38: #{tpu_custom_call.1} parent=1 // pred_check
      _
    $region39: #{tpu_custom_call.1} parent=1 // pred_check_branch
      %77 = sbr.rel (0) target = $region41
    $region40: #{tpu_custom_call.1} parent=1 // pred_region
      %78 = dma.done [#allocation6], 6144
    $region41: #{tpu_custom_call.1} parent=1 // pred_fallthru
      _
    // Predicated region
    $region42: #{tpu_custom_call.1} parent=1 // pred_check
      _
    $region43: #{tpu_custom_call.1} parent=1 // pred_check_branch
      %80 = sbr.rel (0) target = $region45
    $region44: #{tpu_custom_call.1} parent=1 // pred_region
      %81 = dma.done [#allocation9], 3072
    $region45: #{tpu_custom_call.1} parent=1 // pred_fallthru
      _
    %v83 = vld [vmem:[#allocation2] sm:$0xff]
    %v84 = vld [vmem:[#allocation2 + $0x8] sm:$0xff]
    %v85 = vpack.c.bf16 %v84, %v83
    %v86 = vld [vmem:[#allocation5] sm:$0xff]
    %v87 = vld [vmem:[#allocation5 + $0x8] sm:$0xff]
    %v88 = vld [vmem:[#allocation5 + $0x10] sm:$0x33]
    %v89 = vld [vmem:[%s2] sm:$0x3]
    %v91 = vlaneseq
    %v92 = vshrl.u32 %v91, 7
    %v93 = vsub.s32 0, %v92
    %v94 = vrot.slane %v89, %v93
    %v95 = vlaneseq
    %v96 = vshrl.u32 %v95, 7
    %v97 = vsub.s32 1, %v96
    %v98 = vrot.slane %v89, %v97
    %v104 = vunpack.c.l.b16 %v86
    %v105 = vunpack.c.h.b16 %v86
    %v106 = vunpack.c.l.b16 %v87
    %v107 = vunpack.c.h.b16 %v87
    %v108 = vunpack.c.l.b16 %v88
    %v109 = vunpack.c.h.b16 %v88
    %v110 = vpack.c.b16 %v106, %v104
    %v111 = vpack.c.b16 %v107, %v105
    %v112 = vpack.c.b16 %v108, %v108
    %v113 = vpack.c.b16 %v109, %v109
    %vm116 = vcmask 154624
    %v118 = vsel %vm116, %v85, 0
    %vm120 = vcmask 1040384
    %vm121 = vcmask 1041408
    %v122 = vsel %vm120, 4294967295, 65535
    %v123 = vsel %vm121, %v122, 0
    %v125 = vand.u32 %v112, %v123
    %v128 = vand.u32 %v113, %v123
    %130 = vmatprep.subr.bf16.mxu0 0
    %131 = vmatpush1.bf16.msra.mxu0 0
    %132 = vmatprep.subr.bf16.mxu0 0
    %133 = vmatpush1.bf16.msra.mxu0 0
    %134 = vmatprep.subr.bf16.mxu0 0
    %135 = vmatpush1.bf16.msra.mxu0 0
    %136 = vmatprep.subr.bf16.mxu0 0
    %137 = vmatpush1.bf16.msra.mxu0 0
    %138 = vmatprep.subr.bf16.mxu0 0
    %139 = vmatpush1.bf16.msra.mxu0 0
    %140 = vmatprep.subr.bf16.mxu0 0
    %141 = vmatpush1.bf16.msra.mxu0 0
    %142 = vmatprep.subr.bf16.mxu0 %v128
    %143 = vmatpush1.bf16.msra.mxu0 %v125
    %144 = vmatprep.subr.bf16.mxu0 %v111
    %145 = vmatpush1.bf16.msra.mxu0 %v110
    %146 = vmatprep.subr.bf16.mxu0 0
    %147 = vmatpush2.bf16.msra.mxu0 0
    %148 = vmatprep.subr.bf16.mxu0 0
    %149 = vmatpush2.bf16.msra.mxu0 0
    %150 = vmatprep.subr.bf16.mxu0 0
    %151 = vmatpush2.bf16.msra.mxu0 0
    %152 = vmatprep.subr.bf16.mxu0 0
    %153 = vmatpush2.bf16.msra.mxu0 0
    %154 = vmatprep.subr.bf16.mxu0 0
    %155 = vmatpush2.bf16.msra.mxu0 0
    %156 = vmatprep.subr.bf16.mxu0 0
    %157 = vmatpush2.bf16.msra.mxu0 0
    %158 = vmatprep.subr.bf16.mxu0 0
    %159 = vmatpush2.bf16.msra.mxu0 0
    %160 = vmatprep.subr.bf16.mxu0 0
    %161 = vmatpush2.bf16.msra.mxu0 0
    %162 = vmatprep.mubr.bf16.mxu0 0
    %163 = vmatmul.mubr.bf16.gmra.mxu0 %v118
    %v164 = vpop.f32.mrf.mxu0
    %v165 = vadd.f32 %v94, %v164
    %v166 = vpop.f32.mrf.mxu0
    %v167 = vadd.f32 %v98, %v166
    %v168 = vpop.f32.mrf.mxu0
    %v169 = vadd.f32 %v94, %v168
    %v170 = vpop.f32.mrf.mxu0
    %v171 = vadd.f32 %v98, %v170
    %172 = vdwg.mxu0
    %v173 = vmax.f32 %v165, 0.0
    %v174 = vmax.f32 %v167, 0.0
    %v175 = vmax.f32 %v169, 0.0
    %v176 = vmax.f32 %v171, 0.0
    %v177 = vpack.c.bf16 %v175, %v173
    %v178 = vpack.c.bf16 %v176, %v174
    %v179 = vld [vmem:[#allocation7] sm:$0xff]
    %v180 = vld [vmem:[#allocation7 + $0x8] sm:$0xf]
    %v181 = vld [vmem:[#allocation7 + $0xc] sm:$0xff]
    %v182 = vld [vmem:[#allocation7 + $0x14] sm:$0xf]
    %v183 = vld [vmem:[#allocation7 + $0x18] sm:$0xff]
    %v184 = vld [vmem:[#allocation7 + $0x20] sm:$0xf]
    %v185 = vld [vmem:[#allocation7 + $0x24] sm:$0xff]
    %v186 = vld [vmem:[#allocation7 + $0x2c] sm:$0xf]
    %v187 = vld [vmem:[#allocation7 + $0x30] sm:$0xff]
    %v188 = vld [vmem:[#allocation7 + $0x38] sm:$0xf]
    %v189 = vld [vmem:[#allocation7 + $0x3c] sm:$0xff]
    %v190 = vld [vmem:[#allocation7 + $0x44] sm:$0xf]
    %v191 = vld [vmem:[#allocation7 + $0x48] sm:$0xff]
    %v192 = vld [vmem:[#allocation7 + $0x50] sm:$0xf]
    %v193 = vld [vmem:[#allocation7 + $0x54] sm:$0xff]
    %v194 = vld [vmem:[#allocation7 + $0x5c] sm:$0xf]
    %v195 = vld [vmem:[#allocation7 + $0x60] sm:$0xff]
    %v196 = vld [vmem:[#allocation7 + $0x68] sm:$0xf]
    %v197 = vld [vmem:[#allocation7 + $0x6c] sm:$0xff]
    %v198 = vld [vmem:[#allocation7 + $0x74] sm:$0xf]
    %v199 = vld [vmem:[#allocation7 + $0x78] sm:$0xff]
    %v200 = vld [vmem:[#allocation7 + $0x80] sm:$0xf]
    %v201 = vld [vmem:[#allocation7 + $0x84] sm:$0xff]
    %v202 = vld [vmem:[#allocation7 + $0x8c] sm:$0xf]
    %v203 = vld [vmem:[#allocation7 + $0x90] sm:$0xff]
    %v204 = vld [vmem:[#allocation7 + $0x98] sm:$0xf]
    %v205 = vld [vmem:[#allocation7 + $0x9c] sm:$0xff]
    %v206 = vld [vmem:[#allocation7 + $0xa4] sm:$0xf]
    %v207 = vld [vmem:[#allocation7 + $0xa8] sm:$0xff]
    %v208 = vld [vmem:[#allocation7 + $0xb0] sm:$0xf]
    %v209 = vld [vmem:[#allocation7 + $0xb4] sm:$0xff]
    %v210 = vld [vmem:[#allocation7 + $0xbc] sm:$0xf]
    %v211 = vld [vmem:[#allocation7 + $0xc0] sm:$0xff]
    %v212 = vld [vmem:[#allocation7 + $0xc8] sm:$0xf]
    %v213 = vld [vmem:[#allocation7 + $0xcc] sm:$0xff]
    %v214 = vld [vmem:[#allocation7 + $0xd4] sm:$0xf]
    %v215 = vld [vmem:[#allocation7 + $0xd8] sm:$0xff]
    %v216 = vld [vmem:[#allocation7 + $0xe0] sm:$0xf]
    %v217 = vld [vmem:[#allocation7 + $0xe4] sm:$0xff]
    %v218 = vld [vmem:[#allocation7 + $0xec] sm:$0xf]
    %v219 = vld [vmem:[#allocation7 + $0xf0] sm:$0xff]
    %v220 = vld [vmem:[#allocation7 + $0xf8] sm:$0xf]
    %v221 = vld [vmem:[#allocation7 + $0xfc] sm:$0xff]
    %v222 = vld [vmem:[#allocation7 + $0x104] sm:$0xf]
    %v223 = vld [vmem:[#allocation7 + $0x108] sm:$0xff]
    %v224 = vld [vmem:[#allocation7 + $0x110] sm:$0xf]
    %v225 = vld [vmem:[#allocation7 + $0x114] sm:$0xff]
    %v226 = vld [vmem:[#allocation7 + $0x11c] sm:$0xf]
    %v227 = vld [vmem:[#allocation7 + $0x120] sm:$0xff]
    %v228 = vld [vmem:[#allocation7 + $0x128] sm:$0xf]
    %v229 = vld [vmem:[#allocation7 + $0x12c] sm:$0xff]
    %v230 = vld [vmem:[#allocation7 + $0x134] sm:$0xf]
    %v231 = vld [vmem:[#allocation7 + $0x138] sm:$0xff]
    %v232 = vld [vmem:[#allocation7 + $0x140] sm:$0xf]
    %v233 = vld [vmem:[#allocation7 + $0x144] sm:$0xff]
    %v234 = vld [vmem:[#allocation7 + $0x14c] sm:$0xf]
    %v235 = vld [vmem:[#allocation7 + $0x150] sm:$0xff]
    %v236 = vld [vmem:[#allocation7 + $0x158] sm:$0xf]
    %v237 = vld [vmem:[#allocation7 + $0x15c] sm:$0xff]
    %v238 = vld [vmem:[#allocation7 + $0x164] sm:$0xf]
    %v239 = vld [vmem:[#allocation7 + $0x168] sm:$0xff]
    %v240 = vld [vmem:[#allocation7 + $0x170] sm:$0xf]
    %v241 = vld [vmem:[#allocation7 + $0x174] sm:$0xff]
    %v242 = vld [vmem:[#allocation7 + $0x17c] sm:$0xf]
    %v243 = vld [vmem:[%s4] sm:$0x7]
    %v245 = vlaneseq
    %v246 = vshrl.u32 %v245, 7
    %v247 = vsub.s32 0, %v246
    %v248 = vrot.slane %v243, %v247
    %v249 = vlaneseq
    %v250 = vshrl.u32 %v249, 7
    %v251 = vsub.s32 1, %v250
    %v252 = vrot.slane %v243, %v251
    %v253 = vlaneseq
    %v254 = vshrl.u32 %v253, 7
    %v255 = vsub.s32 2, %v254
    %v256 = vrot.slane %v243, %v255
    %v324 = vunpack.c.l.b16 %v179
    %v325 = vunpack.c.h.b16 %v179
    %v326 = vunpack.c.l.b16 %v180
    %v327 = vunpack.c.l.b16 %v181
    %v328 = vunpack.c.h.b16 %v181
    %v329 = vunpack.c.l.b16 %v182
    %v330 = vunpack.c.l.b16 %v183
    %v331 = vunpack.c.h.b16 %v183
    %v332 = vunpack.c.l.b16 %v184
    %v333 = vunpack.c.l.b16 %v185
    %v334 = vunpack.c.h.b16 %v185
    %v335 = vunpack.c.l.b16 %v186
    %v336 = vunpack.c.l.b16 %v187
    %v337 = vunpack.c.h.b16 %v187
    %v338 = vunpack.c.l.b16 %v188
    %v339 = vunpack.c.l.b16 %v189
    %v340 = vunpack.c.h.b16 %v189
    %v341 = vunpack.c.l.b16 %v190
    %v342 = vunpack.c.l.b16 %v191
    %v343 = vunpack.c.h.b16 %v191
    %v344 = vunpack.c.l.b16 %v192
    %v345 = vunpack.c.l.b16 %v193
    %v346 = vunpack.c.h.b16 %v193
    %v347 = vunpack.c.l.b16 %v194
    %v348 = vunpack.c.l.b16 %v195
    %v349 = vunpack.c.h.b16 %v195
    %v350 = vunpack.c.l.b16 %v196
    %v351 = vunpack.c.l.b16 %v197
    %v352 = vunpack.c.h.b16 %v197
    %v353 = vunpack.c.l.b16 %v198
    %v354 = vunpack.c.l.b16 %v199
    %v355 = vunpack.c.h.b16 %v199
    %v356 = vunpack.c.l.b16 %v200
    %v357 = vunpack.c.l.b16 %v201
    %v358 = vunpack.c.h.b16 %v201
    %v359 = vunpack.c.l.b16 %v202
    %v360 = vunpack.c.l.b16 %v203
    %v361 = vunpack.c.h.b16 %v203
    %v362 = vunpack.c.l.b16 %v204
    %v363 = vunpack.c.l.b16 %v205
    %v364 = vunpack.c.h.b16 %v205
    %v365 = vunpack.c.l.b16 %v206
    %v366 = vunpack.c.l.b16 %v207
    %v367 = vunpack.c.h.b16 %v207
    %v368 = vunpack.c.l.b16 %v208
    %v369 = vunpack.c.l.b16 %v209
    %v370 = vunpack.c.h.b16 %v209
    %v371 = vunpack.c.l.b16 %v210
    %v372 = vunpack.c.l.b16 %v211
    %v373 = vunpack.c.h.b16 %v211
    %v374 = vunpack.c.l.b16 %v212
    %v375 = vunpack.c.l.b16 %v213
    %v376 = vunpack.c.h.b16 %v213
    %v377 = vunpack.c.l.b16 %v214
    %v378 = vunpack.c.l.b16 %v215
    %v379 = vunpack.c.h.b16 %v215
    %v380 = vunpack.c.l.b16 %v216
    %v381 = vunpack.c.l.b16 %v217
    %v382 = vunpack.c.h.b16 %v217
    %v383 = vunpack.c.l.b16 %v218
    %v384 = vunpack.c.l.b16 %v219
    %v385 = vunpack.c.h.b16 %v219
    %v386 = vunpack.c.l.b16 %v220
    %v387 = vunpack.c.l.b16 %v221
    %v388 = vunpack.c.h.b16 %v221
    %v389 = vunpack.c.l.b16 %v222
    %v390 = vunpack.c.l.b16 %v223
    %v391 = vunpack.c.h.b16 %v223
    %v392 = vunpack.c.l.b16 %v224
    %v393 = vunpack.c.l.b16 %v225
    %v394 = vunpack.c.h.b16 %v225
    %v395 = vunpack.c.l.b16 %v226
    %v396 = vunpack.c.l.b16 %v227
    %v397 = vunpack.c.h.b16 %v227
    %v398 = vunpack.c.l.b16 %v228
    %v399 = vunpack.c.l.b16 %v229
    %v400 = vunpack.c.h.b16 %v229
    %v401 = vunpack.c.l.b16 %v230
    %v402 = vunpack.c.l.b16 %v231
    %v403 = vunpack.c.h.b16 %v231
    %v404 = vunpack.c.l.b16 %v232
    %v405 = vunpack.c.l.b16 %v233
    %v406 = vunpack.c.h.b16 %v233
    %v407 = vunpack.c.l.b16 %v234
    %v408 = vunpack.c.l.b16 %v235
    %v409 = vunpack.c.h.b16 %v235
    %v410 = vunpack.c.l.b16 %v236
    %v411 = vunpack.c.l.b16 %v237
    %v412 = vunpack.c.h.b16 %v237
    %v413 = vunpack.c.l.b16 %v238
    %v414 = vunpack.c.l.b16 %v239
    %v415 = vunpack.c.h.b16 %v239
    %v416 = vunpack.c.l.b16 %v240
    %v417 = vunpack.c.l.b16 %v241
    %v418 = vunpack.c.h.b16 %v241
    %v419 = vunpack.c.l.b16 %v242
    %v420 = vpack.c.b16 %v327, %v324
    %v421 = vpack.c.b16 %v328, %v325
    %v422 = vpack.c.b16 %v329, %v326
    %v423 = vpack.c.b16 %v333, %v330
    %v424 = vpack.c.b16 %v334, %v331
    %v425 = vpack.c.b16 %v335, %v332
    %v426 = vpack.c.b16 %v339, %v336
    %v427 = vpack.c.b16 %v340, %v337
    %v428 = vpack.c.b16 %v341, %v338
    %v429 = vpack.c.b16 %v345, %v342
    %v430 = vpack.c.b16 %v346, %v343
    %v431 = vpack.c.b16 %v347, %v344
    %v432 = vpack.c.b16 %v351, %v348
    %v433 = vpack.c.b16 %v352, %v349
    %v434 = vpack.c.b16 %v353, %v350
    %v435 = vpack.c.b16 %v357, %v354
    %v436 = vpack.c.b16 %v358, %v355
    %v437 = vpack.c.b16 %v359, %v356
    %v438 = vpack.c.b16 %v363, %v360
    %v439 = vpack.c.b16 %v364, %v361
    %v440 = vpack.c.b16 %v365, %v362
    %v441 = vpack.c.b16 %v369, %v366
    %v442 = vpack.c.b16 %v370, %v367
    %v443 = vpack.c.b16 %v371, %v368
    %v444 = vpack.c.b16 %v375, %v372
    %v445 = vpack.c.b16 %v376, %v373
    %v446 = vpack.c.b16 %v377, %v374
    %v447 = vpack.c.b16 %v381, %v378
    %v448 = vpack.c.b16 %v382, %v379
    %v449 = vpack.c.b16 %v383, %v380
    %v450 = vpack.c.b16 %v387, %v384
    %v451 = vpack.c.b16 %v388, %v385
    %v452 = vpack.c.b16 %v389, %v386
    %v453 = vpack.c.b16 %v393, %v390
    %v454 = vpack.c.b16 %v394, %v391
    %v455 = vpack.c.b16 %v395, %v392
    %v456 = vpack.c.b16 %v399, %v396
    %v457 = vpack.c.b16 %v400, %v397
    %v458 = vpack.c.b16 %v401, %v398
    %v459 = vpack.c.b16 %v405, %v402
    %v460 = vpack.c.b16 %v406, %v403
    %v461 = vpack.c.b16 %v407, %v404
    %v462 = vpack.c.b16 %v411, %v408
    %v463 = vpack.c.b16 %v412, %v409
    %v464 = vpack.c.b16 %v413, %v410
    %v465 = vpack.c.b16 %v417, %v414
    %v466 = vpack.c.b16 %v418, %v415
    %v467 = vpack.c.b16 %v419, %v416
    %516 = vmatprep.subr.bf16.mxu0 %v442
    %517 = vmatpush1.bf16.msra.mxu0 %v441
    %518 = vmatprep.subr.bf16.mxu0 %v439
    %519 = vmatpush1.bf16.msra.mxu0 %v438
    %520 = vmatprep.subr.bf16.mxu0 %v436
    %521 = vmatpush1.bf16.msra.mxu0 %v435
    %522 = vmatprep.subr.bf16.mxu0 %v433
    %523 = vmatpush1.bf16.msra.mxu0 %v432
    %524 = vmatprep.subr.bf16.mxu0 %v430
    %525 = vmatpush1.bf16.msra.mxu0 %v429
    %526 = vmatprep.subr.bf16.mxu0 %v427
    %527 = vmatpush1.bf16.msra.mxu0 %v426
    %528 = vmatprep.subr.bf16.mxu0 %v424
    %529 = vmatpush1.bf16.msra.mxu0 %v423
    %530 = vmatprep.subr.bf16.mxu0 %v421
    %531 = vmatpush1.bf16.msra.mxu0 %v420
    %532 = vmatprep.subr.bf16.mxu0 %v466
    %533 = vmatpush2.bf16.msra.mxu0 %v465
    %534 = vmatprep.subr.bf16.mxu0 %v463
    %535 = vmatpush2.bf16.msra.mxu0 %v462
    %536 = vmatprep.subr.bf16.mxu0 %v460
    %537 = vmatpush2.bf16.msra.mxu0 %v459
    %538 = vmatprep.subr.bf16.mxu0 %v457
    %539 = vmatpush2.bf16.msra.mxu0 %v456
    %540 = vmatprep.subr.bf16.mxu0 %v454
    %541 = vmatpush2.bf16.msra.mxu0 %v453
    %542 = vmatprep.subr.bf16.mxu0 %v451
    %543 = vmatpush2.bf16.msra.mxu0 %v450
    %544 = vmatprep.subr.bf16.mxu0 %v448
    %545 = vmatpush2.bf16.msra.mxu0 %v447
    %546 = vmatprep.subr.bf16.mxu0 %v445
    %547 = vmatpush2.bf16.msra.mxu0 %v444
    %548 = vmatprep.mubr.bf16.mxu0 %v178
    %549 = vmatmul.mubr.bf16.gmra.mxu0 %v177
    %v550 = vpop.f32.mrf.mxu0
    %v551 = vadd.f32 %v248, %v550
    %v552 = vpop.f32.mrf.mxu0
    %v553 = vadd.f32 %v252, %v552
    %v554 = vpop.f32.mrf.mxu0
    %v555 = vadd.f32 %v248, %v554
    %v556 = vpop.f32.mrf.mxu0
    %v557 = vadd.f32 %v252, %v556
    %558 = vdwg.mxu0
    %559 = vmatprep.subr.bf16.mxu0 0
    %560 = vmatpush1.bf16.msra.mxu0 %v443
    %561 = vmatprep.subr.bf16.mxu0 0
    %562 = vmatpush1.bf16.msra.mxu0 %v440
    %563 = vmatprep.subr.bf16.mxu0 0
    %564 = vmatpush1.bf16.msra.mxu0 %v437
    %565 = vmatprep.subr.bf16.mxu0 0
    %566 = vmatpush1.bf16.msra.mxu0 %v434
    %567 = vmatprep.subr.bf16.mxu0 0
    %568 = vmatpush1.bf16.msra.mxu0 %v431
    %569 = vmatprep.subr.bf16.mxu0 0
    %570 = vmatpush1.bf16.msra.mxu0 %v428
    %571 = vmatprep.subr.bf16.mxu0 0
    %572 = vmatpush1.bf16.msra.mxu0 %v425
    %573 = vmatprep.subr.bf16.mxu0 0
    %574 = vmatpush1.bf16.msra.mxu0 %v422
    %575 = vmatprep.subr.bf16.mxu0 0
    %576 = vmatpush2.bf16.msra.mxu0 %v467
    %577 = vmatprep.subr.bf16.mxu0 0
    %578 = vmatpush2.bf16.msra.mxu0 %v464
    %579 = vmatprep.subr.bf16.mxu0 0
    %580 = vmatpush2.bf16.msra.mxu0 %v461
    %581 = vmatprep.subr.bf16.mxu0 0
    %582 = vmatpush2.bf16.msra.mxu0 %v458
    %583 = vmatprep.subr.bf16.mxu0 0
    %584 = vmatpush2.bf16.msra.mxu0 %v455
    %585 = vmatprep.subr.bf16.mxu0 0
    %586 = vmatpush2.bf16.msra.mxu0 %v452
    %587 = vmatprep.subr.bf16.mxu0 0
    %588 = vmatpush2.bf16.msra.mxu0 %v449
    %589 = vmatprep.subr.bf16.mxu0 0
    %590 = vmatpush2.bf16.msra.mxu0 %v446
    %591 = vmatprep.mubr.bf16.mxu0 %v178
    %592 = vmatmul.mubr.bf16.gmra.mxu0 %v177
    %v593 = vpop.f32.mrf.mxu0
    %v594 = vadd.f32 %v256, %v593
    %v595 = vpop.f32.mrf.mxu0
    %v596 = vpop.f32.mrf.mxu0
    %v597 = vadd.f32 %v256, %v596
    %v598 = vpop.f32.mrf.mxu0
    %599 = vdwg.mxu0
    %v600 = vmax.f32 %v551, 0.0
    %v601 = vmax.f32 %v553, 0.0
    %v602 = vmax.f32 %v594, 0.0
    %v603 = vmax.f32 %v555, 0.0
    %v604 = vmax.f32 %v557, 0.0
    %v605 = vmax.f32 %v597, 0.0
    %v606 = vpack.c.bf16 %v603, %v600
    %v607 = vpack.c.bf16 %v604, %v601
    %v608 = vpack.c.bf16 %v605, %v602
    %v609 = vld [vmem:[#allocation8] sm:$0xf]
    %v610 = vld [vmem:[#allocation8 + $0x4] sm:$0xf]
    %v611 = vld [vmem:[#allocation8 + $0x8] sm:$0xf]
    %v612 = vld [vmem:[#allocation8 + $0xc] sm:$0xf]
    %v613 = vld [vmem:[#allocation8 + $0x10] sm:$0xf]
    %v614 = vld [vmem:[#allocation8 + $0x14] sm:$0xf]
    %v615 = vld [vmem:[#allocation8 + $0x18] sm:$0xf]
    %v616 = vld [vmem:[#allocation8 + $0x1c] sm:$0xf]
    %v617 = vld [vmem:[#allocation8 + $0x20] sm:$0xf]
    %v618 = vld [vmem:[#allocation8 + $0x24] sm:$0xf]
    %v619 = vld [vmem:[#allocation8 + $0x28] sm:$0xf]
    %v620 = vld [vmem:[#allocation8 + $0x2c] sm:$0xf]
    %v621 = vld [vmem:[#allocation8 + $0x30] sm:$0xf]
    %v622 = vld [vmem:[#allocation8 + $0x34] sm:$0xf]
    %v623 = vld [vmem:[#allocation8 + $0x38] sm:$0xf]
    %v624 = vld [vmem:[#allocation8 + $0x3c] sm:$0xf]
    %v625 = vld [vmem:[#allocation8 + $0x40] sm:$0xf]
    %v626 = vld [vmem:[#allocation8 + $0x44] sm:$0xf]
    %v627 = vld [vmem:[#allocation8 + $0x48] sm:$0xf]
    %v628 = vld [vmem:[#allocation8 + $0x4c] sm:$0xf]
    %v629 = vld [vmem:[#allocation8 + $0x50] sm:$0xf]
    %v630 = vld [vmem:[#allocation8 + $0x54] sm:$0xf]
    %v631 = vld [vmem:[#allocation8 + $0x58] sm:$0xf]
    %v632 = vld [vmem:[#allocation8 + $0x5c] sm:$0xf]
    %v633 = vld [vmem:[#allocation8 + $0x60] sm:$0xf]
    %v634 = vld [vmem:[#allocation8 + $0x64] sm:$0xf]
    %v635 = vld [vmem:[#allocation8 + $0x68] sm:$0xf]
    %v636 = vld [vmem:[#allocation8 + $0x6c] sm:$0xf]
    %v637 = vld [vmem:[#allocation8 + $0x70] sm:$0xf]
    %v638 = vld [vmem:[#allocation8 + $0x74] sm:$0xf]
    %v639 = vld [vmem:[#allocation8 + $0x78] sm:$0xf]
    %v640 = vld [vmem:[#allocation8 + $0x7c] sm:$0xf]
    %v641 = vld [vmem:[#allocation8 + $0x80] sm:$0xf]
    %v642 = vld [vmem:[#allocation8 + $0x84] sm:$0xf]
    %v643 = vld [vmem:[#allocation8 + $0x88] sm:$0xf]
    %v644 = vld [vmem:[#allocation8 + $0x8c] sm:$0xf]
    %v645 = vld [vmem:[#allocation8 + $0x90] sm:$0xf]
    %v646 = vld [vmem:[#allocation8 + $0x94] sm:$0xf]
    %v647 = vld [vmem:[#allocation8 + $0x98] sm:$0xf]
    %v648 = vld [vmem:[#allocation8 + $0x9c] sm:$0xf]
    %v649 = vld [vmem:[#allocation8 + $0xa0] sm:$0xf]
    %v650 = vld [vmem:[#allocation8 + $0xa4] sm:$0xf]
    %v651 = vld [vmem:[#allocation8 + $0xa8] sm:$0xf]
    %v652 = vld [vmem:[#allocation8 + $0xac] sm:$0xf]
    %v653 = vld [vmem:[#allocation8 + $0xb0] sm:$0xf]
    %v654 = vld [vmem:[#allocation8 + $0xb4] sm:$0xf]
    %v655 = vld [vmem:[#allocation8 + $0xb8] sm:$0xf]
    %v656 = vld [vmem:[#allocation8 + $0xbc] sm:$0xf]
    %v657 = vld [vmem:[%s6] sm:$0x1]
    %v659 = vlaneseq
    %v660 = vshrl.u32 %v659, 7
    %v661 = vsub.s32 0, %v660
    %v662 = vrot.slane %v657, %v661
    %v712 = vunpack.c.l.b16 %v609
    %v713 = vunpack.c.l.b16 %v610
    %v714 = vunpack.c.l.b16 %v611
    %v715 = vunpack.c.l.b16 %v612
    %v716 = vunpack.c.l.b16 %v613
    %v717 = vunpack.c.l.b16 %v614
    %v718 = vunpack.c.l.b16 %v615
    %v719 = vunpack.c.l.b16 %v616
    %v720 = vunpack.c.l.b16 %v617
    %v721 = vunpack.c.l.b16 %v618
    %v722 = vunpack.c.l.b16 %v619
    %v723 = vunpack.c.l.b16 %v620
    %v724 = vunpack.c.l.b16 %v621
    %v725 = vunpack.c.l.b16 %v622
    %v726 = vunpack.c.l.b16 %v623
    %v727 = vunpack.c.l.b16 %v624
    %v728 = vunpack.c.l.b16 %v625
    %v729 = vunpack.c.l.b16 %v626
    %v730 = vunpack.c.l.b16 %v627
    %v731 = vunpack.c.l.b16 %v628
    %v732 = vunpack.c.l.b16 %v629
    %v733 = vunpack.c.l.b16 %v630
    %v734 = vunpack.c.l.b16 %v631
    %v735 = vunpack.c.l.b16 %v632
    %v736 = vunpack.c.l.b16 %v633
    %v737 = vunpack.c.l.b16 %v634
    %v738 = vunpack.c.l.b16 %v635
    %v739 = vunpack.c.l.b16 %v636
    %v740 = vunpack.c.l.b16 %v637
    %v741 = vunpack.c.l.b16 %v638
    %v742 = vunpack.c.l.b16 %v639
    %v743 = vunpack.c.l.b16 %v640
    %v744 = vunpack.c.l.b16 %v641
    %v745 = vunpack.c.l.b16 %v642
    %v746 = vunpack.c.l.b16 %v643
    %v747 = vunpack.c.l.b16 %v644
    %v748 = vunpack.c.l.b16 %v645
    %v749 = vunpack.c.l.b16 %v646
    %v750 = vunpack.c.l.b16 %v647
    %v751 = vunpack.c.l.b16 %v648
    %v752 = vunpack.c.l.b16 %v649
    %v753 = vunpack.c.l.b16 %v650
    %v754 = vunpack.c.l.b16 %v651
    %v755 = vunpack.c.l.b16 %v652
    %v756 = vunpack.c.l.b16 %v653
    %v757 = vunpack.c.l.b16 %v654
    %v758 = vunpack.c.l.b16 %v655
    %v759 = vunpack.c.l.b16 %v656
    %v760 = vpack.c.b16 %v713, %v712
    %v761 = vpack.c.b16 %v715, %v714
    %v762 = vpack.c.b16 %v717, %v716
    %v763 = vpack.c.b16 %v719, %v718
    %v764 = vpack.c.b16 %v721, %v720
    %v765 = vpack.c.b16 %v723, %v722
    %v766 = vpack.c.b16 %v725, %v724
    %v767 = vpack.c.b16 %v727, %v726
    %v768 = vpack.c.b16 %v729, %v728
    %v769 = vpack.c.b16 %v731, %v730
    %v770 = vpack.c.b16 %v733, %v732
    %v771 = vpack.c.b16 %v735, %v734
    %v772 = vpack.c.b16 %v737, %v736
    %v773 = vpack.c.b16 %v739, %v738
    %v774 = vpack.c.b16 %v741, %v740
    %v775 = vpack.c.b16 %v743, %v742
    %v776 = vpack.c.b16 %v745, %v744
    %v777 = vpack.c.b16 %v747, %v746
    %v778 = vpack.c.b16 %v749, %v748
    %v779 = vpack.c.b16 %v751, %v750
    %v780 = vpack.c.b16 %v753, %v752
    %v781 = vpack.c.b16 %v755, %v754
    %v782 = vpack.c.b16 %v757, %v756
    %v783 = vpack.c.b16 %v759, %v758
    %808 = vmatprep.subr.bf16.mxu0 0
    %809 = vmatpush1.bf16.msra.mxu0 %v767
    %810 = vmatprep.subr.bf16.mxu0 0
    %811 = vmatpush1.bf16.msra.mxu0 %v766
    %812 = vmatprep.subr.bf16.mxu0 0
    %813 = vmatpush1.bf16.msra.mxu0 %v765
    %814 = vmatprep.subr.bf16.mxu0 0
    %815 = vmatpush1.bf16.msra.mxu0 %v764
    %816 = vmatprep.subr.bf16.mxu0 0
    %817 = vmatpush1.bf16.msra.mxu0 %v763
    %818 = vmatprep.subr.bf16.mxu0 0
    %819 = vmatpush1.bf16.msra.mxu0 %v762
    %820 = vmatprep.subr.bf16.mxu0 0
    %821 = vmatpush1.bf16.msra.mxu0 %v761
    %822 = vmatprep.subr.bf16.mxu0 0
    %823 = vmatpush1.bf16.msra.mxu0 %v760
    %824 = vmatprep.subr.bf16.mxu0 0
    %825 = vmatpush2.bf16.msra.mxu0 %v775
    %826 = vmatprep.subr.bf16.mxu0 0
    %827 = vmatpush2.bf16.msra.mxu0 %v774
    %828 = vmatprep.subr.bf16.mxu0 0
    %829 = vmatpush2.bf16.msra.mxu0 %v773
    %830 = vmatprep.subr.bf16.mxu0 0
    %831 = vmatpush2.bf16.msra.mxu0 %v772
    %832 = vmatprep.subr.bf16.mxu0 0
    %833 = vmatpush2.bf16.msra.mxu0 %v771
    %834 = vmatprep.subr.bf16.mxu0 0
    %835 = vmatpush2.bf16.msra.mxu0 %v770
    %836 = vmatprep.subr.bf16.mxu0 0
    %837 = vmatpush2.bf16.msra.mxu0 %v769
    %838 = vmatprep.subr.bf16.mxu0 0
    %839 = vmatpush2.bf16.msra.mxu0 %v768
    %840 = vmatprep.mubr.bf16.mxu0 %v607
    %841 = vmatmul.mubr.bf16.gmra.mxu0 %v606
    %v842 = vpop.f32.mrf.mxu0
    %v843 = vadd.f32 %v662, %v842
    %v844 = vpop.f32.mrf.mxu0
    %v845 = vpop.f32.mrf.mxu0
    %v846 = vadd.f32 %v662, %v845
    %v847 = vpop.f32.mrf.mxu0
    %848 = vdwg.mxu0
    %849 = vmatprep.subr.bf16.mxu0 0
    %850 = vmatpush1.bf16.msra.mxu0 %v783
    %851 = vmatprep.subr.bf16.mxu0 0
    %852 = vmatpush1.bf16.msra.mxu0 %v782
    %853 = vmatprep.subr.bf16.mxu0 0
    %854 = vmatpush1.bf16.msra.mxu0 %v781
    %855 = vmatprep.subr.bf16.mxu0 0
    %856 = vmatpush1.bf16.msra.mxu0 %v780
    %857 = vmatprep.subr.bf16.mxu0 0
    %858 = vmatpush1.bf16.msra.mxu0 %v779
    %859 = vmatprep.subr.bf16.mxu0 0
    %860 = vmatpush1.bf16.msra.mxu0 %v778
    %861 = vmatprep.subr.bf16.mxu0 0
    %862 = vmatpush1.bf16.msra.mxu0 %v777
    %863 = vmatprep.subr.bf16.mxu0 0
    %864 = vmatpush1.bf16.msra.mxu0 %v776
    %865 = vmatprep.subr.bf16.mxu0 0
    %866 = vmatpush2.bf16.msra.mxu0 0
    %867 = vmatprep.subr.bf16.mxu0 0
    %868 = vmatpush2.bf16.msra.mxu0 0
    %869 = vmatprep.subr.bf16.mxu0 0
    %870 = vmatpush2.bf16.msra.mxu0 0
    %871 = vmatprep.subr.bf16.mxu0 0
    %872 = vmatpush2.bf16.msra.mxu0 0
    %873 = vmatprep.subr.bf16.mxu0 0
    %874 = vmatpush2.bf16.msra.mxu0 0
    %875 = vmatprep.subr.bf16.mxu0 0
    %876 = vmatpush2.bf16.msra.mxu0 0
    %877 = vmatprep.subr.bf16.mxu0 0
    %878 = vmatpush2.bf16.msra.mxu0 0
    %879 = vmatprep.subr.bf16.mxu0 0
    %880 = vmatpush2.bf16.msra.mxu0 0
    %881 = vmatprep.mubr.bf16.mxu0 0
    %882 = vmatmul.mubr.bf16.gmra.mxu0 %v608
    %v883 = vpop.f32.mrf.mxu0
    %v884 = vadd.f32 %v843, %v883
    %v885 = vpop.f32.mrf.mxu0
    %v886 = vpop.f32.mrf.mxu0
    %v887 = vadd.f32 %v846, %v886
    %v888 = vpop.f32.mrf.mxu0
    %889 = vdwg.mxu0
    %v890 = vmax.f32 %v884, 0.0
    %v891 = vmax.f32 %v887, 0.0
    %v892 = vpack.c.bf16 %v891, %v890
    %v894 = vunpack.c.l.b16 %v892
    %v895 = vunpack.c.h.b16 %v892
    %v896 = vpack.c.b16 %v894, %v894
    %v897 = vpack.c.b16 %v895, %v895
    %900 = vst [vmem:[#allocation10] sm:$0xf] %v896
    %901 = vst [vmem:[#allocation10 + $0x4] sm:$0xf] %v897
    // Predicated region
    $region46: #{tpu_custom_call.1} parent=1 // pred_check
      _
    $region47: #{tpu_custom_call.1} parent=1 // pred_check_branch
      %903 = sbr.rel (0) target = $region49
    $region48: #{tpu_custom_call.1} parent=1 // pred_region
      %s905 = ssub.s32 128, 128
      %906 = vsyncadd [#allocation4], %s905
      %s907 = sshll.u32 [#allocation10], 4
      %s908 = int_to_ptr.vmem [resolvable:$true] %s907
      %913 = dma.vmem_to_hbm [thread:$0]  %s908, 128, %s7, [#allocation4], 64, 64, 4
    $region49: #{tpu_custom_call.1} parent=1 // pred_fallthru
      _
    // Predicated region
    $region50: #{tpu_custom_call.1} parent=1 // pred_check
      _
    $region51: #{tpu_custom_call.1} parent=1 // pred_check_branch
      %915 = sbr.rel (0) target = $region53
    $region52: #{tpu_custom_call.1} parent=1 // pred_region
      %916 = dma.done [#allocation4], 128
    $region53: #{tpu_custom_call.1} parent=1 // pred_fallthru
      _
    %917 = vsyncpa [#allocation3], 1
    %918 = vsyncpa [#allocation6], 1
    %919 = vsyncpa [#allocation9], 1
    %920 = vsyncpa [#allocation4], 1

</llo_original>
